<compile_context>
chip_gen: v7x
topology: tpu7x:2x2x1
jax: 0.10.0
libtpu: 0.0.40
codegen_flags: <defaults>
</compile_context>

<pallas_src>
import functools

import jax
import jax.numpy as jnp
from jax.experimental import pallas as pl
from jax.experimental.pallas import tpu as pltpu


def _masked_affine_kernel(x_ref, m_ref, scale_ref, bias_ref, o_ref):
    # x_ref/o_ref: (TN, TF) blocks of the [N, F] slab.
    # m_ref:       (TN, 1) float32 selection mask (1.0 = transform this row).
    # scale_ref/bias_ref: (1, TF) per-feature affine params (resident across rows).
    x = x_ref[...]
    t = x * scale_ref[...] + bias_ref[...]
    o_ref[...] = jnp.where(m_ref[...] != 0.0, t, x)


def _round_up(v, m):
    return (v + m - 1) // m * m


def _choose_tiles(N, F, elem_bytes=4, main_budget_bytes=8 << 20):
    """Pick (TN, TF, N_pad, F_pad).

    TF: multiple of 128 that divides F_pad (F rounded up to 128), capped at
        2048 lanes.
    TN: multiple of 8, sized so the double-buffered x + out blocks stay under
        `main_budget_bytes` (8 MiB): safe inside v5e's 16 MiB default scoped
        VMEM, and small for v6e (32/128 MiB) and v7x (32/64 MiB).
    """
    F_pad = _round_up(F, 128)
    q = F_pad // 128
    d = 1
    for cand in range(min(16, q), 0, -1):   # TF <= 16 * 128 = 2048 lanes
        if q % cand == 0:
            d = cand
            break
    TF = 128 * d

    # 2 arrays (x, out) * 2 buffers * TN * TF * elem_bytes <= main_budget_bytes
    max_tn = max(8, (main_budget_bytes // (4 * TF * elem_bytes)) // 8 * 8)
    TN = min(_round_up(N, 8), max_tn, 512)
    N_pad = _round_up(N, TN)
    return TN, TF, N_pad, F_pad


@functools.partial(jax.jit, static_argnames=("prop",))
def random_apply(x, prop, scale_c, bias_c, key):
    """x: [N, C, H, W] float32. Returns (x_out [N,C,H,W], label [N] bool)."""
    N, C, H, W = x.shape
    F = C * H * W

    # --- glue: random selection (matches torch.randperm(N)[:int(prop*N)]) ---
    k = int(prop * N)                       # static (prop is a static argname)
    perm = jax.random.permutation(key, N)
    index = perm[:k]                        # (k,) unique row ids
    label = jnp.zeros((N,), dtype=jnp.bool_).at[index].set(True)

    if k == 0:                              # nothing selected: clone semantics only
        return x, label

    TN, TF, N_pad, F_pad = _choose_tiles(N, F)
    n_r = N_pad // TN
    n_f = F_pad // TF

    # --- glue: flatten to a lane-dense [N, F] slab (pad to tile multiples) ---
    x2d = x.reshape(N, F)
    if N_pad != N or F_pad != F:
        x2d = jnp.pad(x2d, ((0, N_pad - N), (0, F_pad - F)))

    # Per-row selection mask as float {0, 1} (padded rows stay 0 => passthrough).
    mask = jnp.zeros((N_pad, 1), dtype=jnp.float32).at[index, 0].set(1.0)

    # Per-feature affine params (broadcast from per-channel) — stay resident in
    # VMEM across the inner row sweep because their block index only depends on j.
    scale_f = jnp.broadcast_to(scale_c[:, None, None], (C, H, W)).reshape(1, F)
    bias_f = jnp.broadcast_to(bias_c[:, None, None], (C, H, W)).reshape(1, F)
    if F_pad != F:
        scale_f = jnp.pad(scale_f, ((0, 0), (0, F_pad - F)), constant_values=1.0)
        bias_f = jnp.pad(bias_f, ((0, 0), (0, F_pad - F)))

    out2d = pl.pallas_call(
        _masked_affine_kernel,
        out_shape=jax.ShapeDtypeStruct((N_pad, F_pad), x.dtype),
        grid_spec=pltpu.PrefetchScalarGridSpec(
            num_scalar_prefetch=0,
            grid=(n_f, n_r),                  # feature outer, rows inner
            in_specs=[
                pl.BlockSpec((TN, TF), lambda j, i: (i, j)),   # x block
                pl.BlockSpec((TN, 1), lambda j, i: (i, 0)),    # row mask
                pl.BlockSpec((1, TF), lambda j, i: (0, j)),    # scale (resident per j)
                pl.BlockSpec((1, TF), lambda j, i: (0, j)),    # bias  (resident per j)
            ],
            out_specs=pl.BlockSpec((TN, TF), lambda j, i: (i, j)),
        ),
        compiler_params=pltpu.CompilerParams(
            dimension_semantics=("parallel", "parallel"),
            vmem_limit_bytes=32 * 1024 * 1024,
        ),
    )(x2d, mask, scale_f, bias_f)

    out2d = out2d[:N, :F]
    return out2d.reshape(N, C, H, W), label


if __name__ == "__main__":
    key = jax.random.PRNGKey(0)
    k_x, k_perm = jax.random.split(key)

    # Small NCHW input: N=16, C=4, H=16, W=16 -> F = 1024 (lane-aligned).
    N, C, H, W = 16, 4, 16, 16
    x = jax.random.normal(k_x, (N, C, H, W), dtype=jnp.float32)

    # Deterministic "transform" parameters (per-channel affine).
    scale_c = jnp.array([1.5, 0.5, -1.0, 2.0], dtype=jnp.float32)
    bias_c = jnp.array([0.1, -0.2, 0.3, 0.0], dtype=jnp.float32)

    prop = 0.25  # -> int(0.25 * 16) = 4 rows transformed

    x_out, label = random_apply(x, prop, scale_c, bias_c, k_perm)
    jax.block_until_ready((x_out, label))

    # Reference check (plain JAX): selected rows affine-transformed, rest untouched.
    ref_t = x * scale_c[None, :, None, None] + bias_c[None, :, None, None]
    ref = jnp.where(label[:, None, None, None], ref_t, x)
    assert int(label.sum()) == int(prop * N)
    assert jnp.allclose(x_out, ref, atol=1e-6), "mismatch vs reference"
    # Non-inplace semantics: caller's x is unmodified (fresh output, no aliasing).
    assert not jnp.allclose(x_out, x), "selected rows should have changed"

    print("KERNEL_OK")
</pallas_src>

<mosaic_0001>
module attributes {stable_mosaic.version = 11 : i64} {
  func.func @_masked_affine_kernel(%arg0: i32, %arg1: i32, %arg2: memref<16x1024xf32, #tpu.memory_space<vmem>>, %arg3: memref<16x1xf32, #tpu.memory_space<vmem>>, %arg4: memref<1x1024xf32, #tpu.memory_space<vmem>>, %arg5: memref<1x1024xf32, #tpu.memory_space<vmem>>, %arg6: memref<16x1024xf32, #tpu.memory_space<vmem>>) attributes {dimension_semantics = [#tpu.dimension_semantics<parallel>, #tpu.dimension_semantics<parallel>], iteration_bounds = array<i64: 1, 1>, scalar_prefetch = 0 : i64, scratch_operands = 0 : i64, tpu.core_type = #tpu.core_type<tc>, window_params = [{transform_indices = @transform_0, window_bounds = array<i64: 16, 1024>}, {transform_indices = @transform_1, window_bounds = array<i64: 16, 1>}, {transform_indices = @transform_2, window_bounds = array<i64: 1, 1024>}, {transform_indices = @transform_3, window_bounds = array<i64: 1, 1024>}, {transform_indices = @transform_4, window_bounds = array<i64: 16, 1024>}]} {
    %c0 = arith.constant 0 : index
    %c0_0 = arith.constant 0 : index
    %0 = vector.load %arg2[%c0, %c0_0] : memref<16x1024xf32, #tpu.memory_space<vmem>>, vector<16x1024xf32>
    %c0_1 = arith.constant 0 : index
    %c0_2 = arith.constant 0 : index
    %1 = vector.load %arg4[%c0_1, %c0_2] : memref<1x1024xf32, #tpu.memory_space<vmem>>, vector<1x1024xf32>
    %2 = vector.broadcast %1 : vector<1x1024xf32> to vector<16x1024xf32>
    %3 = arith.mulf %0, %2 : vector<16x1024xf32>
    %c0_3 = arith.constant 0 : index
    %c0_4 = arith.constant 0 : index
    %4 = vector.load %arg5[%c0_3, %c0_4] : memref<1x1024xf32, #tpu.memory_space<vmem>>, vector<1x1024xf32>
    %5 = vector.broadcast %4 : vector<1x1024xf32> to vector<16x1024xf32>
    %6 = arith.addf %3, %5 : vector<16x1024xf32>
    %c0_5 = arith.constant 0 : index
    %c0_6 = arith.constant 0 : index
    %7 = vector.load %arg3[%c0_5, %c0_6] : memref<16x1xf32, #tpu.memory_space<vmem>>, vector<16x1xf32>
    %cst = arith.constant 0.000000e+00 : f32
    %8 = vector.broadcast %cst : f32 to vector<16x1xf32>
    %9 = arith.cmpf one, %7, %8 : vector<16x1xf32>
    %10 = vector.shape_cast %9 : vector<16x1xi1> to vector<16x1xi1>
    %11 = vector.broadcast %10 : vector<16x1xi1> to vector<16x1024xi1>
    %12 = arith.select %11, %6, %0 : vector<16x1024xi1>, vector<16x1024xf32>
    %c0_7 = arith.constant 0 : index
    %c0_8 = arith.constant 0 : index
    %13 = vector.load %arg6[%c0_7, %c0_8] : memref<16x1024xf32, #tpu.memory_space<vmem>>, vector<16x1024xf32>
    tpu.vector_store %arg6[%c0_7, %c0_8], %12 {strides = array<i32>} : memref<16x1024xf32, #tpu.memory_space<vmem>>, vector<16x1024xf32>,
    return
  }
  func.func @transform_0(%arg0: i32, %arg1: i32) -> (i32, i32) {
    %c0_i32 = arith.constant 0 : i32
    return %arg1, %arg0 : i32, i32
  }
  func.func @transform_1(%arg0: i32, %arg1: i32) -> (i32, i32) {
    %c0_i32 = arith.constant 0 : i32
    %c0_i32_0 = arith.constant 0 : i32
    return %arg1, %c0_i32 : i32, i32
  }
  func.func @transform_2(%arg0: i32, %arg1: i32) -> (i32, i32) {
    %c0_i32 = arith.constant 0 : i32
    %c0_i32_0 = arith.constant 0 : i32
    return %c0_i32, %arg0 : i32, i32
  }
  func.func @transform_3(%arg0: i32, %arg1: i32) -> (i32, i32) {
    %c0_i32 = arith.constant 0 : i32
    %c0_i32_0 = arith.constant 0 : i32
    return %c0_i32, %arg0 : i32, i32
  }
  func.func @transform_4(%arg0: i32, %arg1: i32) -> (i32, i32) {
    %c0_i32 = arith.constant 0 : i32
    return %arg1, %arg0 : i32, i32
  }
}

</mosaic_0001>

<llo_original>
// kernel: random_apply.1
$region0: #{random_apply.1}
  #allocation0 [shape = 'u32[]', space=smem, size = 0x4, offset = 0x4, fixed_abs, tag = 'smem constant byte address 0x4 - core index']
  #allocation1 [shape = 'u32[144,128]{1,0:T(1,128)}', space=vmem, size = 0x12000, scoped, tag = 'internal scratch']
  %s0 = inlined_call_operand.vmem [shape: f32[16,1024], index: 0, kind: input, shape index: {}]
  %s1 = inlined_call_operand.vmem [shape: f32[16,1], index: 1, kind: input, shape index: {}]
  %s2 = inlined_call_operand.vmem [shape: f32[1,1024], index: 2, kind: input, shape index: {}]
  %s3 = inlined_call_operand.vmem [shape: f32[1,1024], index: 3, kind: input, shape index: {}]
  %s4 = inlined_call_operand.vmem [shape: f32[16,1024], index: 4, kind: output, shape index: {}]
  %s5 = sld [smem:[#allocation0]]
  $region26: #{random_apply.1} parent=0
    _
  %s7 = ssub.s32 1, %s5
  %s8 = scalar_select 0, %s7, %s5
  // Predicated region
  $region2: #{random_apply.1} parent=0 // pred_check
    _
  $region3: #{random_apply.1} parent=0 // pred_check_branch
    %10 = sbr.rel (0) target = $region5
  $region4: #{random_apply.1} parent=0 // pred_region
    _
  $region5: #{random_apply.1} parent=0 // pred_fallthru
    _
  // Predicated region
  $region6: #{random_apply.1} parent=0 // pred_check
    _
  $region7: #{random_apply.1} parent=0 // pred_check_branch
    %12 = sbr.rel (0) target = $region9
  $region8: #{random_apply.1} parent=0 // pred_region
    _
  $region9: #{random_apply.1} parent=0 // pred_fallthru
    _
  // Predicated region
  $region10: #{random_apply.1} parent=0 // pred_check
    _
  $region11: #{random_apply.1} parent=0 // pred_check_branch
    %14 = sbr.rel (0) target = $region13
  $region12: #{random_apply.1} parent=0 // pred_region
    _
  $region13: #{random_apply.1} parent=0 // pred_fallthru
    _
  // Predicated region
  $region14: #{random_apply.1} parent=0 // pred_check
    _
  $region15: #{random_apply.1} parent=0 // pred_check_branch
    %16 = sbr.rel (0) target = $region17
  $region16: #{random_apply.1} parent=0 // pred_region
    _
  $region17: #{random_apply.1} parent=0 // pred_fallthru
    _
  %v17 = vld [vmem:[%s0] sm:$0xff]
  %v18 = vld [vmem:[%s0 + $0x8] sm:$0xff]
  %v19 = vld [vmem:[%s0 + $0x10] sm:$0xff]
  %v20 = vld [vmem:[%s0 + $0x18] sm:$0xff]
  %v21 = vld [vmem:[%s0 + $0x20] sm:$0xff]
  %v22 = vld [vmem:[%s0 + $0x28] sm:$0xff]
  %v23 = vld [vmem:[%s0 + $0x30] sm:$0xff]
  %v24 = vld [vmem:[%s0 + $0x38] sm:$0xff]
  %v25 = vld [vmem:[%s0 + $0x40] sm:$0xff]
  %v26 = vld [vmem:[%s0 + $0x48] sm:$0xff]
  %v27 = vld [vmem:[%s0 + $0x50] sm:$0xff]
  %v28 = vld [vmem:[%s0 + $0x58] sm:$0xff]
  %v29 = vld [vmem:[%s0 + $0x60] sm:$0xff]
  %v30 = vld [vmem:[%s0 + $0x68] sm:$0xff]
  %v31 = vld [vmem:[%s0 + $0x70] sm:$0xff]
  %v32 = vld [vmem:[%s0 + $0x78] sm:$0xff]
  %v33 = vld [vmem:[%s2] sm:$0xff]
  %v35 = vlaneseq
  %v36 = vshrl.u32 %v35, 7
  %v37 = vsub.s32 0, %v36
  %v38 = vrot.slane %v33, %v37
  %v39 = vlaneseq
  %v40 = vshrl.u32 %v39, 7
  %v41 = vsub.s32 1, %v40
  %v42 = vrot.slane %v33, %v41
  %v43 = vlaneseq
  %v44 = vshrl.u32 %v43, 7
  %v45 = vsub.s32 2, %v44
  %v46 = vrot.slane %v33, %v45
  %v47 = vlaneseq
  %v48 = vshrl.u32 %v47, 7
  %v49 = vsub.s32 3, %v48
  %v50 = vrot.slane %v33, %v49
  %v51 = vlaneseq
  %v52 = vshrl.u32 %v51, 7
  %v53 = vsub.s32 4, %v52
  %v54 = vrot.slane %v33, %v53
  %v55 = vlaneseq
  %v56 = vshrl.u32 %v55, 7
  %v57 = vsub.s32 5, %v56
  %v58 = vrot.slane %v33, %v57
  %v59 = vlaneseq
  %v60 = vshrl.u32 %v59, 7
  %v61 = vsub.s32 6, %v60
  %v62 = vrot.slane %v33, %v61
  %v63 = vlaneseq
  %v64 = vshrl.u32 %v63, 7
  %v65 = vsub.s32 7, %v64
  %v66 = vrot.slane %v33, %v65
  %v75 = vmul.f32 %v17, %v38
  %v76 = vmul.f32 %v18, %v42
  %v77 = vmul.f32 %v19, %v46
  %v78 = vmul.f32 %v20, %v50
  %v79 = vmul.f32 %v21, %v54
  %v80 = vmul.f32 %v22, %v58
  %v81 = vmul.f32 %v23, %v62
  %v82 = vmul.f32 %v24, %v66
  %v83 = vmul.f32 %v25, %v38
  %v84 = vmul.f32 %v26, %v42
  %v85 = vmul.f32 %v27, %v46
  %v86 = vmul.f32 %v28, %v50
  %v87 = vmul.f32 %v29, %v54
  %v88 = vmul.f32 %v30, %v58
  %v89 = vmul.f32 %v31, %v62
  %v90 = vmul.f32 %v32, %v66
  %v91 = vld [vmem:[%s3] sm:$0xff]
  %v93 = vlaneseq
  %v94 = vshrl.u32 %v93, 7
  %v95 = vsub.s32 0, %v94
  %v96 = vrot.slane %v91, %v95
  %v97 = vlaneseq
  %v98 = vshrl.u32 %v97, 7
  %v99 = vsub.s32 1, %v98
  %v100 = vrot.slane %v91, %v99
  %v101 = vlaneseq
  %v102 = vshrl.u32 %v101, 7
  %v103 = vsub.s32 2, %v102
  %v104 = vrot.slane %v91, %v103
  %v105 = vlaneseq
  %v106 = vshrl.u32 %v105, 7
  %v107 = vsub.s32 3, %v106
  %v108 = vrot.slane %v91, %v107
  %v109 = vlaneseq
  %v110 = vshrl.u32 %v109, 7
  %v111 = vsub.s32 4, %v110
  %v112 = vrot.slane %v91, %v111
  %v113 = vlaneseq
  %v114 = vshrl.u32 %v113, 7
  %v115 = vsub.s32 5, %v114
  %v116 = vrot.slane %v91, %v115
  %v117 = vlaneseq
  %v118 = vshrl.u32 %v117, 7
  %v119 = vsub.s32 6, %v118
  %v120 = vrot.slane %v91, %v119
  %v121 = vlaneseq
  %v122 = vshrl.u32 %v121, 7
  %v123 = vsub.s32 7, %v122
  %v124 = vrot.slane %v91, %v123
  %v133 = vadd.f32 %v75, %v96
  %v134 = vadd.f32 %v76, %v100
  %v135 = vadd.f32 %v77, %v104
  %v136 = vadd.f32 %v78, %v108
  %v137 = vadd.f32 %v79, %v112
  %v138 = vadd.f32 %v80, %v116
  %v139 = vadd.f32 %v81, %v120
  %v140 = vadd.f32 %v82, %v124
  %v141 = vadd.f32 %v83, %v96
  %v142 = vadd.f32 %v84, %v100
  %v143 = vadd.f32 %v85, %v104
  %v144 = vadd.f32 %v86, %v108
  %v145 = vadd.f32 %v87, %v112
  %v146 = vadd.f32 %v88, %v116
  %v147 = vadd.f32 %v89, %v120
  %v148 = vadd.f32 %v90, %v124
  %v149 = vld [vmem:[%s1] sm:$0xff]
  %v150 = vld [vmem:[%s1 + $0x8] sm:$0xff]
  %vm151 = vcmp.ne.f32.partialorder %v149, 0.0
  %vm152 = vcmp.ne.f32.partialorder %v150, 0.0
  %v153 = vsel %vm151, 1, 0
  %v154 = vsel %vm152, 1, 0
  %155 = vset.pattern.permute.xlu0 0
  %156 = vperm.xlu0 %155, %v153
  %v157 = vpop.permute.xlu0 %156
  %158 = vset.pattern.permute.xlu0 0
  %159 = vperm.xlu0 %158, %v154
  %v160 = vpop.permute.xlu0 %159
  %vm161 = vcmp.eq.s32.totalorder %v157, 1
  %vm162 = vcmp.eq.s32.totalorder %v160, 1
  %v163 = vsel %vm161, %v133, %v17
  %v164 = vsel %vm161, %v134, %v18
  %v165 = vsel %vm161, %v135, %v19
  %v166 = vsel %vm161, %v136, %v20
  %v167 = vsel %vm161, %v137, %v21
  %v168 = vsel %vm161, %v138, %v22
  %v169 = vsel %vm161, %v139, %v23
  %v170 = vsel %vm161, %v140, %v24
  %v171 = vsel %vm162, %v141, %v25
  %v172 = vsel %vm162, %v142, %v26
  %v173 = vsel %vm162, %v143, %v27
  %v174 = vsel %vm162, %v144, %v28
  %v175 = vsel %vm162, %v145, %v29
  %v176 = vsel %vm162, %v146, %v30
  %v177 = vsel %vm162, %v147, %v31
  %v178 = vsel %vm162, %v148, %v32
  %179 = vst [vmem:[%s4] sm:$0xff] %v163
  %180 = vst [vmem:[%s4 + $0x8] sm:$0xff] %v164
  %181 = vst [vmem:[%s4 + $0x10] sm:$0xff] %v165
  %182 = vst [vmem:[%s4 + $0x18] sm:$0xff] %v166
  %183 = vst [vmem:[%s4 + $0x20] sm:$0xff] %v167
  %184 = vst [vmem:[%s4 + $0x28] sm:$0xff] %v168
  %185 = vst [vmem:[%s4 + $0x30] sm:$0xff] %v169
  %186 = vst [vmem:[%s4 + $0x38] sm:$0xff] %v170
  %187 = vst [vmem:[%s4 + $0x40] sm:$0xff] %v171
  %188 = vst [vmem:[%s4 + $0x48] sm:$0xff] %v172
  %189 = vst [vmem:[%s4 + $0x50] sm:$0xff] %v173
  %190 = vst [vmem:[%s4 + $0x58] sm:$0xff] %v174
  %191 = vst [vmem:[%s4 + $0x60] sm:$0xff] %v175
  %192 = vst [vmem:[%s4 + $0x68] sm:$0xff] %v176
  %193 = vst [vmem:[%s4 + $0x70] sm:$0xff] %v177
  %194 = vst [vmem:[%s4 + $0x78] sm:$0xff] %v178
  // Predicated region
  $region18: #{random_apply.1} parent=0 // pred_check
    _
  $region19: #{random_apply.1} parent=0 // pred_check_branch
    %196 = sbr.rel (0) target = $region21
  $region20: #{random_apply.1} parent=0 // pred_region
    _
  $region21: #{random_apply.1} parent=0 // pred_fallthru
    _
  // Predicated region
  $region22: #{random_apply.1} parent=0 // pred_check
    _
  $region23: #{random_apply.1} parent=0 // pred_check_branch
    %198 = sbr.rel (0) target = $region25
  $region24: #{random_apply.1} parent=0 // pred_region
    _
  $region25: #{random_apply.1} parent=0 // pred_fallthru
    _

</llo_original>
